<compile_context>
chip_gen: v7x
topology: tpu7x:2x2x1
jax: 0.10.0
libtpu: 0.0.40
codegen_flags: <defaults>
</compile_context>

<pallas_src>
import functools
import math

import jax
import jax.numpy as jnp
from jax.experimental import pallas as pl
from jax.experimental.pallas import tpu as pltpu

LOG_STD_MAX = 2.0
LOG_STD_MIN = -20.0
CLIP_MAX = 3.0
LN_EPS = 1e-5          # torch.nn.LayerNorm default
OUT_LANES = 128        # lane-dense output slab: [0:A]=action, [A]=logp, rest pad


def _layernorm(h, w, b):
    m = jnp.mean(h, axis=-1, keepdims=True)
    v = jnp.mean((h - m) ** 2, axis=-1, keepdims=True)   # biased variance (torch)
    return (h - m) * jax.lax.rsqrt(v + LN_EPS) * w + b


def _softplus(x):
    # numerically stable softplus
    return jnp.maximum(x, 0.0) + jnp.log1p(jnp.exp(-jnp.abs(x)))


def actor_kernel(x_ref, eps_ref,
                 ln1w_ref, ln1b_ref, w1_ref, b1_ref,
                 ln2w_ref, ln2b_ref, w2_ref, b2_ref,
                 ln3w_ref, ln3b_ref, w3_ref, b3_ref,
                 whead_ref, bhead_ref,
                 out_ref,
                 *, act_dim, max_action, deterministic, with_logprob,
                 forced_exploration):
    mm_dt = w1_ref.dtype     # matmul operand dtype (bf16 fast path or f32)
    A = act_dim

    x = x_ref[...].astype(jnp.float32)

    # norm1 + clip (all elementwise math stays f32; bf16 only feeds the MXU)
    x = _layernorm(x, ln1w_ref[...], ln1b_ref[...])
    x = jnp.clip(x, -CLIP_MAX, CLIP_MAX)

    # fc1 + relu -> norm2 -> fc2 + relu -> norm3 -> fc3 + relu
    h = jnp.maximum(
        jnp.dot(x.astype(mm_dt), w1_ref[...],
                preferred_element_type=jnp.float32) + b1_ref[...], 0.0)
    h = _layernorm(h, ln2w_ref[...], ln2b_ref[...])
    h = jnp.maximum(
        jnp.dot(h.astype(mm_dt), w2_ref[...],
                preferred_element_type=jnp.float32) + b2_ref[...], 0.0)
    h = _layernorm(h, ln3w_ref[...], ln3b_ref[...])
    net = jnp.maximum(
        jnp.dot(h.astype(mm_dt), w3_ref[...],
                preferred_element_type=jnp.float32) + b3_ref[...], 0.0)

    # fused heads: single (256, 2A) matmul; bias already carries the '-1' of
    # the log_std layer.  Split mu / log_std with static lane slices.
    head = (jnp.dot(net.astype(mm_dt), whead_ref[...],
                    preferred_element_type=jnp.float32) + bhead_ref[...])
    mu = head[:, :A]
    log_std = jnp.clip(head[:, A:2 * A], LOG_STD_MIN, LOG_STD_MAX)

    if deterministic:
        pre = mu                                   # pi_action = mu
    else:
        std = jnp.exp(log_std) * forced_exploration
        eps = eps_ref[...].astype(jnp.float32)
        pre = mu + std * eps                       # Normal(mu, std).rsample()

    act = (max_action * jnp.tanh(pre)).astype(jnp.float32)
    rows = act.shape[0]

    if with_logprob:
        # -log(std) == -(log_std + log(forced_exploration)) : no exp->log trip
        log_fe = (math.log(forced_exploration) if forced_exploration > 0.0
                  else float("-inf"))
        z_sq = jnp.zeros_like(mu) if deterministic else eps * eps
        logp = jnp.sum(-(log_std + log_fe)
                       - 0.5 * math.log(2.0 * math.pi)
                       - 0.5 * z_sq, axis=-1, keepdims=True)
        logp = logp - jnp.sum(2.0 * (math.log(2.0) - pre - _softplus(-2.0 * pre)),
                              axis=-1, keepdims=True)
        slab = jnp.concatenate(
            [act, logp, jnp.zeros((rows, OUT_LANES - A - 1), jnp.float32)],
            axis=-1)
    else:
        slab = jnp.concatenate(
            [act, jnp.zeros((rows, OUT_LANES - A), jnp.float32)], axis=-1)

    out_ref[...] = slab      # single lane-dense full-block store


def _round_up(n, m):
    return ((n + m - 1) // m) * m


def actor_forward(x, eps, params, *, max_action,
                  with_logprob=False, deterministic=False, forced_exploration=1.0,
                  block_m=256, matmul_dtype=jnp.bfloat16):
    """Pallas forward pass. x: (B, obs+goal) f32; eps: (B, action) f32."""
    B, in_dim = x.shape
    A = params["whead"].shape[1] // 2
    assert A + 1 <= OUT_LANES

    # batch tiling: TM rows per grid step; weights stay VMEM-resident.
    tm = min(block_m, _round_up(B, 8))
    b_pad = _round_up(B, tm)
    if b_pad != B:
        x = jnp.pad(x, ((0, b_pad - B), (0, 0)))
        eps = jnp.pad(eps, ((0, b_pad - B), (0, 0)))
    num_tiles = b_pad // tm

    mm = lambda w: w.astype(matmul_dtype)
    weights = (
        params["ln1w"], params["ln1b"], mm(params["w1"]), params["b1"],
        params["ln2w"], params["ln2b"], mm(params["w2"]), params["b2"],
        params["ln3w"], params["ln3b"], mm(params["w3"]), params["b3"],
        mm(params["whead"]), params["bhead"],
    )

    def resident(a):
        nd = a.ndim
        return pl.BlockSpec(a.shape, lambda i, _nd=nd: (0,) * _nd)

    in_specs = ([pl.BlockSpec((tm, in_dim), lambda i: (i, 0)),
                 pl.BlockSpec((tm, A), lambda i: (i, 0))]
                + [resident(a) for a in weights])
    out_spec = pl.BlockSpec((tm, OUT_LANES), lambda i: (i, 0))

    hidden = params["w2"].shape[0]
    flops = 2 * b_pad * (in_dim * hidden + 2 * hidden * hidden + hidden * 2 * A)
    w_bytes = sum(int(a.size) * a.dtype.itemsize for a in weights)
    bytes_accessed = int(w_bytes + b_pad * (in_dim + A + OUT_LANES) * 4)
    cost = pl.CostEstimate(flops=int(flops),
                           transcendentals=int(b_pad * 6 * A),
                           bytes_accessed=bytes_accessed)

    kernel = functools.partial(
        actor_kernel,
        act_dim=A,
        max_action=float(max_action),
        deterministic=bool(deterministic),
        with_logprob=bool(with_logprob),
        forced_exploration=float(forced_exploration),
    )

    slab = pl.pallas_call(
        kernel,
        grid=(num_tiles,),
        in_specs=in_specs,
        out_specs=out_spec,
        out_shape=jax.ShapeDtypeStruct((b_pad, OUT_LANES), jnp.float32),
        compiler_params=pltpu.CompilerParams(
            dimension_semantics=("parallel",),
        ),
        cost_estimate=cost,
    )(x, eps, *weights)

    pi_action = slab[:B, :A]
    if with_logprob:
        return pi_action, slab[:B, A]
    return pi_action


def init_actor_params(key, obs, goal, action, hidden=256):
    """Matches the torch module's shapes; Linear: U(+/- 1/sqrt(fan_in)),
    weights stored (in, out); LayerNorm weight=1, bias=0.  The two heads are
    stored fused: whead = [wmu | wls], bhead = [bmu | (bls - 1)]."""
    in_dim = obs + goal

    def linear(k, fan_in, fan_out):
        kw, kb = jax.random.split(k)
        bound = 1.0 / math.sqrt(fan_in)
        w = jax.random.uniform(kw, (fan_in, fan_out), jnp.float32, -bound, bound)
        b = jax.random.uniform(kb, (1, fan_out), jnp.float32, -bound, bound)
        return w, b

    k1, k2, k3, k4, k5 = jax.random.split(key, 5)
    w1, b1 = linear(k1, in_dim, hidden)
    w2, b2 = linear(k2, hidden, hidden)
    w3, b3 = linear(k3, hidden, hidden)
    wmu, bmu = linear(k4, hidden, action)
    wls, bls = linear(k5, hidden, action)

    return dict(
        ln1w=jnp.ones((1, in_dim), jnp.float32), ln1b=jnp.zeros((1, in_dim), jnp.float32),
        ln2w=jnp.ones((1, hidden), jnp.float32), ln2b=jnp.zeros((1, hidden), jnp.float32),
        ln3w=jnp.ones((1, hidden), jnp.float32), ln3b=jnp.zeros((1, hidden), jnp.float32),
        w1=w1, b1=b1, w2=w2, b2=b2, w3=w3, b3=b3,
        whead=jnp.concatenate([wmu, wls], axis=1),
        bhead=jnp.concatenate([bmu, bls - 1.0], axis=1),   # fold the '-1' offset
    )


def actor_reference(x, eps, params, *, max_action, with_logprob=False,
                    deterministic=False, forced_exploration=1.0):
    """Pure-JAX reference of the torch forward (for correctness checks)."""
    A = params["whead"].shape[1] // 2
    h = jnp.clip(_layernorm(x, params["ln1w"], params["ln1b"]), -CLIP_MAX, CLIP_MAX)
    h = jax.nn.relu(h @ params["w1"] + params["b1"])
    h = _layernorm(h, params["ln2w"], params["ln2b"])
    h = jax.nn.relu(h @ params["w2"] + params["b2"])
    h = _layernorm(h, params["ln3w"], params["ln3b"])
    net = jax.nn.relu(h @ params["w3"] + params["b3"])
    head = net @ params["whead"] + params["bhead"]
    mu = head[:, :A]
    log_std = jnp.clip(head[:, A:], LOG_STD_MIN, LOG_STD_MAX)
    std = jnp.exp(log_std) * forced_exploration
    pre = mu if deterministic else mu + std * eps
    act = max_action * jnp.tanh(pre)
    if not with_logprob:
        return act
    z = jnp.zeros_like(mu) if deterministic else eps
    logp = jnp.sum(-jnp.log(std) - 0.5 * jnp.log(2.0 * jnp.pi) - 0.5 * z * z, axis=-1)
    logp = logp - jnp.sum(2.0 * (jnp.log(2.0) - pre - jax.nn.softplus(-2.0 * pre)),
                          axis=-1)
    return act, logp


# TODO(synk): set_normalizers / normed_forward (o_norm/g_norm objects) are host
# side preprocessing in the torch module and are not part of this kernel.

if __name__ == "__main__":
    env = {"obs": 10, "goal": 5, "action": 4, "action_max": 1.0}
    B = 8
    in_dim = env["obs"] + env["goal"]

    key = jax.random.PRNGKey(0)
    k_p, k_x, k_e = jax.random.split(key, 3)
    params = init_actor_params(k_p, env["obs"], env["goal"], env["action"])
    x = jax.random.normal(k_x, (B, in_dim), jnp.float32)
    eps = jax.random.normal(k_e, (B, env["action"]), jnp.float32)

    # stochastic forward with log-prob, f32 matmul path, checked vs reference
    act, logp = actor_forward(x, eps, params, max_action=env["action_max"],
                              with_logprob=True, deterministic=False,
                              forced_exploration=1.0,
                              matmul_dtype=jnp.float32)
    act_r, logp_r = actor_reference(x, eps, params, max_action=env["action_max"],
                                    with_logprob=True, deterministic=False)
    jax.block_until_ready((act, logp))
    assert act.shape == (B, env["action"]) and logp.shape == (B,)
    assert jnp.allclose(act, act_r, atol=1e-2, rtol=1e-2)
    assert jnp.allclose(logp, logp_r, atol=1e-2, rtol=1e-2)

    # deterministic forward, default bf16 matmul fast path, no logp
    act_det = actor_forward(x, eps, params, max_action=env["action_max"],
                            deterministic=True)
    jax.block_until_ready(act_det)
    assert act_det.shape == (B, env["action"])

    # larger batch exercising padding + multi-tile grid (parallel batch axis)
    B2 = 200
    x2 = jax.random.normal(k_x, (B2, in_dim), jnp.float32)
    eps2 = jax.random.normal(k_e, (B2, env["action"]), jnp.float32)
    act2, logp2 = actor_forward(x2, eps2, params, max_action=env["action_max"],
                                with_logprob=True, block_m=64)
    jax.block_until_ready((act2, logp2))
    assert act2.shape == (B2, env["action"]) and logp2.shape == (B2,)

    print("KERNEL_OK")
</pallas_src>

<mosaic_0001>
module attributes {stable_mosaic.version = 11 : i64} {
  func.func @actor_kernel(%arg0: i32, %arg1: memref<8x15xf32, #tpu.memory_space<vmem>>, %arg2: memref<8x4xf32, #tpu.memory_space<vmem>>, %arg3: memref<1x15xf32, #tpu.memory_space<vmem>>, %arg4: memref<1x15xf32, #tpu.memory_space<vmem>>, %arg5: memref<15x256xf32, #tpu.memory_space<vmem>>, %arg6: memref<1x256xf32, #tpu.memory_space<vmem>>, %arg7: memref<1x256xf32, #tpu.memory_space<vmem>>, %arg8: memref<1x256xf32, #tpu.memory_space<vmem>>, %arg9: memref<256x256xf32, #tpu.memory_space<vmem>>, %arg10: memref<1x256xf32, #tpu.memory_space<vmem>>, %arg11: memref<1x256xf32, #tpu.memory_space<vmem>>, %arg12: memref<1x256xf32, #tpu.memory_space<vmem>>, %arg13: memref<256x256xf32, #tpu.memory_space<vmem>>, %arg14: memref<1x256xf32, #tpu.memory_space<vmem>>, %arg15: memref<256x8xf32, #tpu.memory_space<vmem>>, %arg16: memref<1x8xf32, #tpu.memory_space<vmem>>, %arg17: memref<8x128xf32, #tpu.memory_space<vmem>>) attributes {dimension_semantics = [#tpu.dimension_semantics<parallel>], iteration_bounds = array<i64: 1>, scalar_prefetch = 0 : i64, scratch_operands = 0 : i64, tpu.core_type = #tpu.core_type<tc>, window_params = [{transform_indices = @transform_0, window_bounds = array<i64: 8, 15>}, {transform_indices = @transform_1, window_bounds = array<i64: 8, 4>}, {pipeline_mode = #tpu.pipeline_mode<synchronous>, transform_indices = @transform_2, window_bounds = array<i64: 1, 15>}, {pipeline_mode = #tpu.pipeline_mode<synchronous>, transform_indices = @transform_3, window_bounds = array<i64: 1, 15>}, {pipeline_mode = #tpu.pipeline_mode<synchronous>, transform_indices = @transform_4, window_bounds = array<i64: 15, 256>}, {pipeline_mode = #tpu.pipeline_mode<synchronous>, transform_indices = @transform_5, window_bounds = array<i64: 1, 256>}, {pipeline_mode = #tpu.pipeline_mode<synchronous>, transform_indices = @transform_6, window_bounds = array<i64: 1, 256>}, {pipeline_mode = #tpu.pipeline_mode<synchronous>, transform_indices = @transform_7, window_bounds = array<i64: 1, 256>}, {pipeline_mode = #tpu.pipeline_mode<synchronous>, transform_indices = @transform_8, window_bounds = array<i64: 256, 256>}, {pipeline_mode = #tpu.pipeline_mode<synchronous>, transform_indices = @transform_9, window_bounds = array<i64: 1, 256>}, {pipeline_mode = #tpu.pipeline_mode<synchronous>, transform_indices = @transform_10, window_bounds = array<i64: 1, 256>}, {pipeline_mode = #tpu.pipeline_mode<synchronous>, transform_indices = @transform_11, window_bounds = array<i64: 1, 256>}, {pipeline_mode = #tpu.pipeline_mode<synchronous>, transform_indices = @transform_12, window_bounds = array<i64: 256, 256>}, {pipeline_mode = #tpu.pipeline_mode<synchronous>, transform_indices = @transform_13, window_bounds = array<i64: 1, 256>}, {pipeline_mode = #tpu.pipeline_mode<synchronous>, transform_indices = @transform_14, window_bounds = array<i64: 256, 8>}, {pipeline_mode = #tpu.pipeline_mode<synchronous>, transform_indices = @transform_15, window_bounds = array<i64: 1, 8>}, {transform_indices = @transform_16, window_bounds = array<i64: 8, 128>}]} {
    %c0 = arith.constant 0 : index
    %c0_0 = arith.constant 0 : index
    %0 = vector.load %arg1[%c0, %c0_0] : memref<8x15xf32, #tpu.memory_space<vmem>>, vector<8x15xf32>
    %c0_1 = arith.constant 0 : index
    %c0_2 = arith.constant 0 : index
    %1 = vector.load %arg3[%c0_1, %c0_2] : memref<1x15xf32, #tpu.memory_space<vmem>>, vector<1x15xf32>
    %c0_3 = arith.constant 0 : index
    %c0_4 = arith.constant 0 : index
    %2 = vector.load %arg4[%c0_3, %c0_4] : memref<1x15xf32, #tpu.memory_space<vmem>>, vector<1x15xf32>
    %cst = arith.constant dense<0.000000e+00> : vector<8xf32>
    %3 = vector.multi_reduction <add>, %0, %cst [1] : vector<8x15xf32> to vector<8xf32>
    %4 = vector.shape_cast %3 : vector<8xf32> to vector<8x1xf32>
    %cst_5 = arith.constant 1.500000e+01 : f32
    %5 = vector.broadcast %cst_5 : f32 to vector<8x1xf32>
    %6 = arith.divf %4, %5 : vector<8x1xf32>
    %7 = vector.broadcast %6 : vector<8x1xf32> to vector<8x15xf32>
    %8 = arith.subf %0, %7 : vector<8x15xf32>
    %9 = arith.mulf %8, %8 : vector<8x15xf32>
    %cst_6 = arith.constant dense<0.000000e+00> : vector<8xf32>
    %10 = vector.multi_reduction <add>, %9, %cst_6 [1] : vector<8x15xf32> to vector<8xf32>
    %11 = vector.shape_cast %10 : vector<8xf32> to vector<8x1xf32>
    %cst_7 = arith.constant 1.500000e+01 : f32
    %12 = vector.broadcast %cst_7 : f32 to vector<8x1xf32>
    %13 = arith.divf %11, %12 : vector<8x1xf32>
    %14 = vector.broadcast %6 : vector<8x1xf32> to vector<8x15xf32>
    %15 = arith.subf %0, %14 : vector<8x15xf32>
    %cst_8 = arith.constant 9.99999974E-6 : f32
    %16 = vector.broadcast %cst_8 : f32 to vector<8x1xf32>
    %17 = arith.addf %13, %16 : vector<8x1xf32>
    %18 = math.rsqrt %17 : vector<8x1xf32>
    %19 = vector.broadcast %18 : vector<8x1xf32> to vector<8x15xf32>
    %20 = arith.mulf %15, %19 : vector<8x15xf32>
    %21 = vector.broadcast %1 : vector<1x15xf32> to vector<8x15xf32>
    %22 = arith.mulf %20, %21 : vector<8x15xf32>
    %23 = vector.broadcast %2 : vector<1x15xf32> to vector<8x15xf32>
    %24 = arith.addf %22, %23 : vector<8x15xf32>
    %cst_9 = arith.constant -3.000000e+00 : f32
    %cst_10 = arith.constant 3.000000e+00 : f32
    %25 = vector.broadcast %cst_9 : f32 to vector<8x15xf32>
    %26 = arith.maximumf %25, %24 : vector<8x15xf32>
    %27 = vector.broadcast %cst_10 : f32 to vector<8x15xf32>
    %28 = arith.minimumf %27, %26 : vector<8x15xf32>
    %c0_11 = arith.constant 0 : index
    %c0_12 = arith.constant 0 : index
    %29 = vector.load %arg5[%c0_11, %c0_12] : memref<15x256xf32, #tpu.memory_space<vmem>>, vector<15x256xf32>
    %cst_13 = arith.constant dense<0.000000e+00> : vector<8x256xf32>
    %30 = tpu.matmul %28, %29, %cst_13 {dimension_numbers = #tpu.dot_dimension_numbers<[1], [0], [0], [1], [0, 0, 1, 1], [], []>} : vector<8x15xf32>, vector<15x256xf32>, vector<8x256xf32> -> vector<8x256xf32>
    %c0_14 = arith.constant 0 : index
    %c0_15 = arith.constant 0 : index
    %31 = vector.load %arg6[%c0_14, %c0_15] : memref<1x256xf32, #tpu.memory_space<vmem>>, vector<1x256xf32>
    %32 = vector.broadcast %31 : vector<1x256xf32> to vector<8x256xf32>
    %33 = arith.addf %30, %32 : vector<8x256xf32>
    %cst_16 = arith.constant 0.000000e+00 : f32
    %34 = vector.broadcast %cst_16 : f32 to vector<8x256xf32>
    %35 = arith.maximumf %33, %34 : vector<8x256xf32>
    %c0_17 = arith.constant 0 : index
    %c0_18 = arith.constant 0 : index
    %36 = vector.load %arg7[%c0_17, %c0_18] : memref<1x256xf32, #tpu.memory_space<vmem>>, vector<1x256xf32>
    %c0_19 = arith.constant 0 : index
    %c0_20 = arith.constant 0 : index
    %37 = vector.load %arg8[%c0_19, %c0_20] : memref<1x256xf32, #tpu.memory_space<vmem>>, vector<1x256xf32>
    %cst_21 = arith.constant dense<0.000000e+00> : vector<8xf32>
    %38 = vector.multi_reduction <add>, %35, %cst_21 [1] : vector<8x256xf32> to vector<8xf32>
    %39 = vector.shape_cast %38 : vector<8xf32> to vector<8x1xf32>
    %cst_22 = arith.constant 2.560000e+02 : f32
    %40 = vector.broadcast %cst_22 : f32 to vector<8x1xf32>
    %41 = arith.divf %39, %40 : vector<8x1xf32>
    %42 = vector.broadcast %41 : vector<8x1xf32> to vector<8x256xf32>
    %43 = arith.subf %35, %42 : vector<8x256xf32>
    %44 = arith.mulf %43, %43 : vector<8x256xf32>
    %cst_23 = arith.constant dense<0.000000e+00> : vector<8xf32>
    %45 = vector.multi_reduction <add>, %44, %cst_23 [1] : vector<8x256xf32> to vector<8xf32>
    %46 = vector.shape_cast %45 : vector<8xf32> to vector<8x1xf32>
    %cst_24 = arith.constant 2.560000e+02 : f32
    %47 = vector.broadcast %cst_24 : f32 to vector<8x1xf32>
    %48 = arith.divf %46, %47 : vector<8x1xf32>
    %49 = vector.broadcast %41 : vector<8x1xf32> to vector<8x256xf32>
    %50 = arith.subf %35, %49 : vector<8x256xf32>
    %cst_25 = arith.constant 9.99999974E-6 : f32
    %51 = vector.broadcast %cst_25 : f32 to vector<8x1xf32>
    %52 = arith.addf %48, %51 : vector<8x1xf32>
    %53 = math.rsqrt %52 : vector<8x1xf32>
    %54 = vector.broadcast %53 : vector<8x1xf32> to vector<8x256xf32>
    %55 = arith.mulf %50, %54 : vector<8x256xf32>
    %56 = vector.broadcast %36 : vector<1x256xf32> to vector<8x256xf32>
    %57 = arith.mulf %55, %56 : vector<8x256xf32>
    %58 = vector.broadcast %37 : vector<1x256xf32> to vector<8x256xf32>
    %59 = arith.addf %57, %58 : vector<8x256xf32>
    %c0_26 = arith.constant 0 : index
    %c0_27 = arith.constant 0 : index
    %60 = vector.load %arg9[%c0_26, %c0_27] : memref<256x256xf32, #tpu.memory_space<vmem>>, vector<256x256xf32>
    %cst_28 = arith.constant dense<0.000000e+00> : vector<8x256xf32>
    %61 = tpu.matmul %59, %60, %cst_28 {dimension_numbers = #tpu.dot_dimension_numbers<[1], [0], [0], [1], [0, 0, 1, 1], [], []>} : vector<8x256xf32>, vector<256x256xf32>, vector<8x256xf32> -> vector<8x256xf32>
    %c0_29 = arith.constant 0 : index
    %c0_30 = arith.constant 0 : index
    %62 = vector.load %arg10[%c0_29, %c0_30] : memref<1x256xf32, #tpu.memory_space<vmem>>, vector<1x256xf32>
    %63 = vector.broadcast %62 : vector<1x256xf32> to vector<8x256xf32>
    %64 = arith.addf %61, %63 : vector<8x256xf32>
    %cst_31 = arith.constant 0.000000e+00 : f32
    %65 = vector.broadcast %cst_31 : f32 to vector<8x256xf32>
    %66 = arith.maximumf %64, %65 : vector<8x256xf32>
    %c0_32 = arith.constant 0 : index
    %c0_33 = arith.constant 0 : index
    %67 = vector.load %arg11[%c0_32, %c0_33] : memref<1x256xf32, #tpu.memory_space<vmem>>, vector<1x256xf32>
    %c0_34 = arith.constant 0 : index
    %c0_35 = arith.constant 0 : index
    %68 = vector.load %arg12[%c0_34, %c0_35] : memref<1x256xf32, #tpu.memory_space<vmem>>, vector<1x256xf32>
    %cst_36 = arith.constant dense<0.000000e+00> : vector<8xf32>
    %69 = vector.multi_reduction <add>, %66, %cst_36 [1] : vector<8x256xf32> to vector<8xf32>
    %70 = vector.shape_cast %69 : vector<8xf32> to vector<8x1xf32>
    %cst_37 = arith.constant 2.560000e+02 : f32
    %71 = vector.broadcast %cst_37 : f32 to vector<8x1xf32>
    %72 = arith.divf %70, %71 : vector<8x1xf32>
    %73 = vector.broadcast %72 : vector<8x1xf32> to vector<8x256xf32>
    %74 = arith.subf %66, %73 : vector<8x256xf32>
    %75 = arith.mulf %74, %74 : vector<8x256xf32>
    %cst_38 = arith.constant dense<0.000000e+00> : vector<8xf32>
    %76 = vector.multi_reduction <add>, %75, %cst_38 [1] : vector<8x256xf32> to vector<8xf32>
    %77 = vector.shape_cast %76 : vector<8xf32> to vector<8x1xf32>
    %cst_39 = arith.constant 2.560000e+02 : f32
    %78 = vector.broadcast %cst_39 : f32 to vector<8x1xf32>
    %79 = arith.divf %77, %78 : vector<8x1xf32>
    %80 = vector.broadcast %72 : vector<8x1xf32> to vector<8x256xf32>
    %81 = arith.subf %66, %80 : vector<8x256xf32>
    %cst_40 = arith.constant 9.99999974E-6 : f32
    %82 = vector.broadcast %cst_40 : f32 to vector<8x1xf32>
    %83 = arith.addf %79, %82 : vector<8x1xf32>
    %84 = math.rsqrt %83 : vector<8x1xf32>
    %85 = vector.broadcast %84 : vector<8x1xf32> to vector<8x256xf32>
    %86 = arith.mulf %81, %85 : vector<8x256xf32>
    %87 = vector.broadcast %67 : vector<1x256xf32> to vector<8x256xf32>
    %88 = arith.mulf %86, %87 : vector<8x256xf32>
    %89 = vector.broadcast %68 : vector<1x256xf32> to vector<8x256xf32>
    %90 = arith.addf %88, %89 : vector<8x256xf32>
    %c0_41 = arith.constant 0 : index
    %c0_42 = arith.constant 0 : index
    %91 = vector.load %arg13[%c0_41, %c0_42] : memref<256x256xf32, #tpu.memory_space<vmem>>, vector<256x256xf32>
    %cst_43 = arith.constant dense<0.000000e+00> : vector<8x256xf32>
    %92 = tpu.matmul %90, %91, %cst_43 {dimension_numbers = #tpu.dot_dimension_numbers<[1], [0], [0], [1], [0, 0, 1, 1], [], []>} : vector<8x256xf32>, vector<256x256xf32>, vector<8x256xf32> -> vector<8x256xf32>
    %c0_44 = arith.constant 0 : index
    %c0_45 = arith.constant 0 : index
    %93 = vector.load %arg14[%c0_44, %c0_45] : memref<1x256xf32, #tpu.memory_space<vmem>>, vector<1x256xf32>
    %94 = vector.broadcast %93 : vector<1x256xf32> to vector<8x256xf32>
    %95 = arith.addf %92, %94 : vector<8x256xf32>
    %cst_46 = arith.constant 0.000000e+00 : f32
    %96 = vector.broadcast %cst_46 : f32 to vector<8x256xf32>
    %97 = arith.maximumf %95, %96 : vector<8x256xf32>
    %c0_47 = arith.constant 0 : index
    %c0_48 = arith.constant 0 : index
    %98 = vector.load %arg15[%c0_47, %c0_48] : memref<256x8xf32, #tpu.memory_space<vmem>>, vector<256x8xf32>
    %cst_49 = arith.constant dense<0.000000e+00> : vector<8x8xf32>
    %99 = tpu.matmul %97, %98, %cst_49 {dimension_numbers = #tpu.dot_dimension_numbers<[1], [0], [0], [1], [0, 0, 1, 1], [], []>} : vector<8x256xf32>, vector<256x8xf32>, vector<8x8xf32> -> vector<8x8xf32>
    %c0_50 = arith.constant 0 : index
    %c0_51 = arith.constant 0 : index
    %100 = vector.load %arg16[%c0_50, %c0_51] : memref<1x8xf32, #tpu.memory_space<vmem>>, vector<1x8xf32>
    %101 = vector.broadcast %100 : vector<1x8xf32> to vector<8x8xf32>
    %102 = arith.addf %99, %101 : vector<8x8xf32>
    %103 = vector.extract_strided_slice %102 {offsets = [0, 0], sizes = [8, 4], strides = [1, 1]} : vector<8x8xf32> to vector<8x4xf32>
    %104 = vector.extract_strided_slice %102 {offsets = [0, 4], sizes = [8, 4], strides = [1, 1]} : vector<8x8xf32> to vector<8x4xf32>
    %cst_52 = arith.constant -2.000000e+01 : f32
    %cst_53 = arith.constant 2.000000e+00 : f32
    %105 = vector.broadcast %cst_52 : f32 to vector<8x4xf32>
    %106 = arith.maximumf %105, %104 : vector<8x4xf32>
    %107 = vector.broadcast %cst_53 : f32 to vector<8x4xf32>
    %108 = arith.minimumf %107, %106 : vector<8x4xf32>
    %109 = math.exp %108 : vector<8x4xf32>
    %cst_54 = arith.constant 1.000000e+00 : f32
    %110 = vector.broadcast %cst_54 : f32 to vector<8x4xf32>
    %111 = arith.mulf %109, %110 : vector<8x4xf32>
    %c0_55 = arith.constant 0 : index
    %c0_56 = arith.constant 0 : index
    %112 = vector.load %arg2[%c0_55, %c0_56] : memref<8x4xf32, #tpu.memory_space<vmem>>, vector<8x4xf32>
    %113 = arith.mulf %111, %112 : vector<8x4xf32>
    %114 = arith.addf %103, %113 : vector<8x4xf32>
    %115 = math.tanh %114 : vector<8x4xf32>
    %cst_57 = arith.constant 1.000000e+00 : f32
    %116 = vector.broadcast %cst_57 : f32 to vector<8x4xf32>
    %117 = arith.mulf %116, %115 : vector<8x4xf32>
    %118 = arith.mulf %112, %112 : vector<8x4xf32>
    %cst_58 = arith.constant 0.000000e+00 : f32
    %119 = vector.broadcast %cst_58 : f32 to vector<8x4xf32>
    %120 = arith.addf %108, %119 : vector<8x4xf32>
    %cst_59 = arith.constant 0.000000e+00 : f32
    %121 = vector.broadcast %cst_59 : f32 to vector<8x4xf32>
    %122 = arith.subf %121, %120 : vector<8x4xf32>
    %cst_60 = arith.constant 0.918938517 : f32
    %123 = vector.broadcast %cst_60 : f32 to vector<8x4xf32>
    %124 = arith.subf %122, %123 : vector<8x4xf32>
    %cst_61 = arith.constant 5.000000e-01 : f32
    %125 = vector.broadcast %cst_61 : f32 to vector<8x4xf32>
    %126 = arith.mulf %125, %118 : vector<8x4xf32>
    %127 = arith.subf %124, %126 : vector<8x4xf32>
    %cst_62 = arith.constant dense<0.000000e+00> : vector<8xf32>
    %128 = vector.multi_reduction <add>, %127, %cst_62 [1] : vector<8x4xf32> to vector<8xf32>
    %129 = vector.shape_cast %128 : vector<8xf32> to vector<8x1xf32>
    %cst_63 = arith.constant 0.693147182 : f32
    %130 = vector.broadcast %cst_63 : f32 to vector<8x4xf32>
    %131 = arith.subf %130, %114 : vector<8x4xf32>
    %cst_64 = arith.constant -2.000000e+00 : f32
    %132 = vector.broadcast %cst_64 : f32 to vector<8x4xf32>
    %133 = arith.mulf %132, %114 : vector<8x4xf32>
    %cst_65 = arith.constant 0.000000e+00 : f32
    %134 = vector.broadcast %cst_65 : f32 to vector<8x4xf32>
    %135 = arith.maximumf %133, %134 : vector<8x4xf32>
    %136 = math.absf %133 : vector<8x4xf32>
    %cst_66 = arith.constant 0.000000e+00 : f32
    %137 = vector.broadcast %cst_66 : f32 to vector<8x4xf32>
    %138 = arith.subf %137, %136 : vector<8x4xf32>
    %139 = math.exp %138 : vector<8x4xf32>
    %140 = math.log1p %139 : vector<8x4xf32>
    %141 = arith.addf %135, %140 : vector<8x4xf32>
    %142 = arith.subf %131, %141 : vector<8x4xf32>
    %cst_67 = arith.constant 2.000000e+00 : f32
    %143 = vector.broadcast %cst_67 : f32 to vector<8x4xf32>
    %144 = arith.mulf %143, %142 : vector<8x4xf32>
    %cst_68 = arith.constant dense<0.000000e+00> : vector<8xf32>
    %145 = vector.multi_reduction <add>, %144, %cst_68 [1] : vector<8x4xf32> to vector<8xf32>
    %146 = vector.shape_cast %145 : vector<8xf32> to vector<8x1xf32>
    %147 = arith.subf %129, %146 : vector<8x1xf32>
    %cst_69 = arith.constant 0.000000e+00 : f32
    %148 = vector.broadcast %cst_69 : f32 to vector<8x123xf32>
    %149 = tpu.concatenate %117, %147, %148 in 1 : vector<8x4xf32>, vector<8x1xf32>, vector<8x123xf32> -> vector<8x128xf32>
    %c0_70 = arith.constant 0 : index
    %c0_71 = arith.constant 0 : index
    %150 = vector.load %arg17[%c0_70, %c0_71] : memref<8x128xf32, #tpu.memory_space<vmem>>, vector<8x128xf32>
    tpu.vector_store %arg17[%c0_70, %c0_71], %149 {strides = array<i32>} : memref<8x128xf32, #tpu.memory_space<vmem>>, vector<8x128xf32>,
    return
  }
  func.func @transform_0(%arg0: i32) -> (i32, i32) {
    %c0_i32 = arith.constant 0 : i32
    %c0_i32_0 = arith.constant 0 : i32
    return %arg0, %c0_i32 : i32, i32
  }
  func.func @transform_1(%arg0: i32) -> (i32, i32) {
    %c0_i32 = arith.constant 0 : i32
    %c0_i32_0 = arith.constant 0 : i32
    return %arg0, %c0_i32 : i32, i32
  }
  func.func @transform_2(%arg0: i32) -> (i32, i32) {
    %c0_i32 = arith.constant 0 : i32
    %c0_i32_0 = arith.constant 0 : i32
    %c0_i32_1 = arith.constant 0 : i32
    return %c0_i32, %c0_i32_0 : i32, i32
  }
  func.func @transform_3(%arg0: i32) -> (i32, i32) {
    %c0_i32 = arith.constant 0 : i32
    %c0_i32_0 = arith.constant 0 : i32
    %c0_i32_1 = arith.constant 0 : i32
    return %c0_i32, %c0_i32_0 : i32, i32
  }
  func.func @transform_4(%arg0: i32) -> (i32, i32) {
    %c0_i32 = arith.constant 0 : i32
    %c0_i32_0 = arith.constant 0 : i32
    %c0_i32_1 = arith.constant 0 : i32
    return %c0_i32, %c0_i32_0 : i32, i32
  }
  func.func @transform_5(%arg0: i32) -> (i32, i32) {
    %c0_i32 = arith.constant 0 : i32
    %c0_i32_0 = arith.constant 0 : i32
    %c0_i32_1 = arith.constant 0 : i32
    return %c0_i32, %c0_i32_0 : i32, i32
  }
  func.func @transform_6(%arg0: i32) -> (i32, i32) {
    %c0_i32 = arith.constant 0 : i32
    %c0_i32_0 = arith.constant 0 : i32
    %c0_i32_1 = arith.constant 0 : i32
    return %c0_i32, %c0_i32_0 : i32, i32
  }
  func.func @transform_7(%arg0: i32) -> (i32, i32) {
    %c0_i32 = arith.constant 0 : i32
    %c0_i32_0 = arith.constant 0 : i32
    %c0_i32_1 = arith.constant 0 : i32
    return %c0_i32, %c0_i32_0 : i32, i32
  }
  func.func @transform_8(%arg0: i32) -> (i32, i32) {
    %c0_i32 = arith.constant 0 : i32
    %c0_i32_0 = arith.constant 0 : i32
    %c0_i32_1 = arith.constant 0 : i32
    return %c0_i32, %c0_i32_0 : i32, i32
  }
  func.func @transform_9(%arg0: i32) -> (i32, i32) {
    %c0_i32 = arith.constant 0 : i32
    %c0_i32_0 = arith.constant 0 : i32
    %c0_i32_1 = arith.constant 0 : i32
    return %c0_i32, %c0_i32_0 : i32, i32
  }
  func.func @transform_10(%arg0: i32) -> (i32, i32) {
    %c0_i32 = arith.constant 0 : i32
    %c0_i32_0 = arith.constant 0 : i32
    %c0_i32_1 = arith.constant 0 : i32
    return %c0_i32, %c0_i32_0 : i32, i32
  }
  func.func @transform_11(%arg0: i32) -> (i32, i32) {
    %c0_i32 = arith.constant 0 : i32
    %c0_i32_0 = arith.constant 0 : i32
    %c0_i32_1 = arith.constant 0 : i32
    return %c0_i32, %c0_i32_0 : i32, i32
  }
  func.func @transform_12(%arg0: i32) -> (i32, i32) {
    %c0_i32 = arith.constant 0 : i32
    %c0_i32_0 = arith.constant 0 : i32
    %c0_i32_1 = arith.constant 0 : i32
    return %c0_i32, %c0_i32_0 : i32, i32
  }
  func.func @transform_13(%arg0: i32) -> (i32, i32) {
    %c0_i32 = arith.constant 0 : i32
    %c0_i32_0 = arith.constant 0 : i32
    %c0_i32_1 = arith.constant 0 : i32
    return %c0_i32, %c0_i32_0 : i32, i32
  }
  func.func @transform_14(%arg0: i32) -> (i32, i32) {
    %c0_i32 = arith.constant 0 : i32
    %c0_i32_0 = arith.constant 0 : i32
    %c0_i32_1 = arith.constant 0 : i32
    return %c0_i32, %c0_i32_0 : i32, i32
  }
  func.func @transform_15(%arg0: i32) -> (i32, i32) {
    %c0_i32 = arith.constant 0 : i32
    %c0_i32_0 = arith.constant 0 : i32
    %c0_i32_1 = arith.constant 0 : i32
    return %c0_i32, %c0_i32_0 : i32, i32
  }
  func.func @transform_16(%arg0: i32) -> (i32, i32) {
    %c0_i32 = arith.constant 0 : i32
    %c0_i32_0 = arith.constant 0 : i32
    return %arg0, %c0_i32 : i32, i32
  }
}

</mosaic_0001>

<llo_original>
// kernel: tpu_custom_call.1
$region0: #{tpu_custom_call.1}
  #allocation0 [shape = 'u32[]', space=smem, size = 0x4, offset = 0x4, fixed_abs, tag = 'smem constant byte address 0x4 - core index']
  #allocation1 [shape = 'u32[144,128]{1,0:T(1,128)}', space=vmem, size = 0x12000, scoped, tag = 'internal scratch']
  %s0 = inlined_call_operand.vmem [shape: f32[8,15], index: 0, kind: input, shape index: {}]
  %s1 = inlined_call_operand.vmem [shape: f32[8,4], index: 1, kind: input, shape index: {}]
  %s2 = inlined_call_operand.vmem [shape: f32[1,15], index: 2, kind: input, shape index: {}]
  %s3 = inlined_call_operand.vmem [shape: f32[1,15], index: 3, kind: input, shape index: {}]
  %s4 = inlined_call_operand.vmem [shape: f32[15,256], index: 4, kind: input, shape index: {}]
  %s5 = inlined_call_operand.vmem [shape: f32[1,256], index: 5, kind: input, shape index: {}]
  %s6 = inlined_call_operand.vmem [shape: f32[1,256], index: 6, kind: input, shape index: {}]
  %s7 = inlined_call_operand.vmem [shape: f32[1,256], index: 7, kind: input, shape index: {}]
  %s8 = inlined_call_operand.hbm [shape: f32[256,256], index: 8, kind: input, shape index: {}]
  %s9 = inlined_call_operand.vmem [shape: f32[1,256], index: 9, kind: input, shape index: {}]
  %s10 = inlined_call_operand.vmem [shape: f32[1,256], index: 10, kind: input, shape index: {}]
  %s11 = inlined_call_operand.vmem [shape: f32[1,256], index: 11, kind: input, shape index: {}]
  %s12 = inlined_call_operand.hbm [shape: f32[256,256], index: 12, kind: input, shape index: {}]
  %s13 = inlined_call_operand.vmem [shape: f32[1,256], index: 13, kind: input, shape index: {}]
  %s14 = inlined_call_operand.vmem [shape: f32[256,8], index: 14, kind: input, shape index: {}]
  %s15 = inlined_call_operand.vmem [shape: f32[1,8], index: 15, kind: input, shape index: {}]
  %s16 = inlined_call_operand.hbm [shape: f32[8,128], index: 16, kind: output, shape index: {}]
  %s17 = sld [smem:[#allocation0]]
  $region82: #{tpu_custom_call.1} parent=0
    _
  %s19 = ssub.s32 1, %s17
  %s20 = scalar_select 0, %s19, %s17
  $region1: #{tpu_custom_call.1} parent=0
    #allocation2 [shape = 'u8[262144]{0}', space=vmem, size = 0x40000, scoped, tag = 'input window, operand 8, single buffered']
    #allocation3 [shape = 's32[1]{0}', space=sflag, size = 0x4, scoped, tag = 'scoped memory for tpu_custom_call.1']
    #allocation4 [shape = 's32[1]{0}', space=sflag, size = 0x4, scoped, tag = 'scoped memory for tpu_custom_call.1']
    #allocation5 [shape = 'u8[262144]{0}', space=vmem, size = 0x40000, scoped, tag = 'input window, operand 12, single buffered']
    #allocation6 [shape = 's32[1]{0}', space=sflag, size = 0x4, scoped, tag = 'scoped memory for tpu_custom_call.1']
    #allocation7 [shape = 'u8[4096]{0}', space=vmem, size = 0x1000, scoped, tag = 'output window, operand 0, single buffered']
    %21 = vsyncpa [#allocation3], 0
    %22 = vsyncpa [#allocation6], 0
    %23 = vsyncpa [#allocation4], 0
    // Predicated region
    $region2: #{tpu_custom_call.1} parent=1 // pred_check
      _
    $region3: #{tpu_custom_call.1} parent=1 // pred_check_branch
      %25 = sbr.rel (0) target = $region5
    $region4: #{tpu_custom_call.1} parent=1 // pred_region
      _
    $region5: #{tpu_custom_call.1} parent=1 // pred_fallthru
      _
    // Predicated region
    $region6: #{tpu_custom_call.1} parent=1 // pred_check
      _
    $region7: #{tpu_custom_call.1} parent=1 // pred_check_branch
      %27 = sbr.rel (0) target = $region9
    $region8: #{tpu_custom_call.1} parent=1 // pred_region
      _
    $region9: #{tpu_custom_call.1} parent=1 // pred_fallthru
      _
    // Predicated region
    $region10: #{tpu_custom_call.1} parent=1 // pred_check
      _
    $region11: #{tpu_custom_call.1} parent=1 // pred_check_branch
      %29 = sbr.rel (0) target = $region13
    $region12: #{tpu_custom_call.1} parent=1 // pred_region
      _
    $region13: #{tpu_custom_call.1} parent=1 // pred_fallthru
      _
    // Predicated region
    $region14: #{tpu_custom_call.1} parent=1 // pred_check
      _
    $region15: #{tpu_custom_call.1} parent=1 // pred_check_branch
      %31 = sbr.rel (0) target = $region17
    $region16: #{tpu_custom_call.1} parent=1 // pred_region
      _
    $region17: #{tpu_custom_call.1} parent=1 // pred_fallthru
      _
    // Predicated region
    $region18: #{tpu_custom_call.1} parent=1 // pred_check
      _
    $region19: #{tpu_custom_call.1} parent=1 // pred_check_branch
      %33 = sbr.rel (0) target = $region21
    $region20: #{tpu_custom_call.1} parent=1 // pred_region
      _
    $region21: #{tpu_custom_call.1} parent=1 // pred_fallthru
      _
    // Predicated region
    $region22: #{tpu_custom_call.1} parent=1 // pred_check
      _
    $region23: #{tpu_custom_call.1} parent=1 // pred_check_branch
      %35 = sbr.rel (0) target = $region25
    $region24: #{tpu_custom_call.1} parent=1 // pred_region
      _
    $region25: #{tpu_custom_call.1} parent=1 // pred_fallthru
      _
    // Predicated region
    $region26: #{tpu_custom_call.1} parent=1 // pred_check
      _
    $region27: #{tpu_custom_call.1} parent=1 // pred_check_branch
      %37 = sbr.rel (0) target = $region29
    $region28: #{tpu_custom_call.1} parent=1 // pred_region
      _
    $region29: #{tpu_custom_call.1} parent=1 // pred_fallthru
      _
    // Predicated region
    $region30: #{tpu_custom_call.1} parent=1 // pred_check
      _
    $region31: #{tpu_custom_call.1} parent=1 // pred_check_branch
      %39 = sbr.rel (0) target = $region33
    $region32: #{tpu_custom_call.1} parent=1 // pred_region
      _
    $region33: #{tpu_custom_call.1} parent=1 // pred_fallthru
      _
    // Predicated region
    $region34: #{tpu_custom_call.1} parent=1 // pred_check
      _
    $region35: #{tpu_custom_call.1} parent=1 // pred_check_branch
      %41 = sbr.rel (0) target = $region37
    $region36: #{tpu_custom_call.1} parent=1 // pred_region
      %s43 = ssub.s32 8192, 8192
      %44 = vsyncadd [#allocation3], %s43
      %s45 = sshll.u32 [#allocation2], 4
      %s46 = int_to_ptr.vmem [resolvable:$true] %s45
      %51 = dma.hbm_to_vmem [thread:$0]  %s8, 8192, %s46, [#allocation3], 256, 256, 16
    $region37: #{tpu_custom_call.1} parent=1 // pred_fallthru
      _
    // Predicated region
    $region38: #{tpu_custom_call.1} parent=1 // pred_check
      _
    $region39: #{tpu_custom_call.1} parent=1 // pred_check_branch
      %53 = sbr.rel (0) target = $region41
    $region40: #{tpu_custom_call.1} parent=1 // pred_region
      _
    $region41: #{tpu_custom_call.1} parent=1 // pred_fallthru
      _
    // Predicated region
    $region42: #{tpu_custom_call.1} parent=1 // pred_check
      _
    $region43: #{tpu_custom_call.1} parent=1 // pred_check_branch
      %55 = sbr.rel (0) target = $region45
    $region44: #{tpu_custom_call.1} parent=1 // pred_region
      _
    $region45: #{tpu_custom_call.1} parent=1 // pred_fallthru
      _
    // Predicated region
    $region46: #{tpu_custom_call.1} parent=1 // pred_check
      _
    $region47: #{tpu_custom_call.1} parent=1 // pred_check_branch
      %57 = sbr.rel (0) target = $region49
    $region48: #{tpu_custom_call.1} parent=1 // pred_region
      _
    $region49: #{tpu_custom_call.1} parent=1 // pred_fallthru
      _
    // Predicated region
    $region50: #{tpu_custom_call.1} parent=1 // pred_check
      _
    $region51: #{tpu_custom_call.1} parent=1 // pred_check_branch
      %59 = sbr.rel (0) target = $region53
    $region52: #{tpu_custom_call.1} parent=1 // pred_region
      %s61 = ssub.s32 8192, 8192
      %62 = vsyncadd [#allocation6], %s61
      %s63 = sshll.u32 [#allocation5], 4
      %s64 = int_to_ptr.vmem [resolvable:$true] %s63
      %69 = dma.hbm_to_vmem [thread:$0]  %s12, 8192, %s64, [#allocation6], 256, 256, 16
    $region53: #{tpu_custom_call.1} parent=1 // pred_fallthru
      _
    // Predicated region
    $region54: #{tpu_custom_call.1} parent=1 // pred_check
      _
    $region55: #{tpu_custom_call.1} parent=1 // pred_check_branch
      %71 = sbr.rel (0) target = $region57
    $region56: #{tpu_custom_call.1} parent=1 // pred_region
      _
    $region57: #{tpu_custom_call.1} parent=1 // pred_fallthru
      _
    // Predicated region
    $region58: #{tpu_custom_call.1} parent=1 // pred_check
      _
    $region59: #{tpu_custom_call.1} parent=1 // pred_check_branch
      %73 = sbr.rel (0) target = $region61
    $region60: #{tpu_custom_call.1} parent=1 // pred_region
      _
    $region61: #{tpu_custom_call.1} parent=1 // pred_fallthru
      _
    // Predicated region
    $region62: #{tpu_custom_call.1} parent=1 // pred_check
      _
    $region63: #{tpu_custom_call.1} parent=1 // pred_check_branch
      %75 = sbr.rel (0) target = $region65
    $region64: #{tpu_custom_call.1} parent=1 // pred_region
      _
    $region65: #{tpu_custom_call.1} parent=1 // pred_fallthru
      _
    // Predicated region
    $region66: #{tpu_custom_call.1} parent=1 // pred_check
      _
    $region67: #{tpu_custom_call.1} parent=1 // pred_check_branch
      %77 = sbr.rel (0) target = $region69
    $region68: #{tpu_custom_call.1} parent=1 // pred_region
      %78 = dma.done [#allocation3], 8192
    $region69: #{tpu_custom_call.1} parent=1 // pred_fallthru
      _
    // Predicated region
    $region70: #{tpu_custom_call.1} parent=1 // pred_check
      _
    $region71: #{tpu_custom_call.1} parent=1 // pred_check_branch
      %80 = sbr.rel (0) target = $region73
    $region72: #{tpu_custom_call.1} parent=1 // pred_region
      %81 = dma.done [#allocation6], 8192
    $region73: #{tpu_custom_call.1} parent=1 // pred_fallthru
      _
    %v82 = vld [vmem:[%s0] sm:$0xff]
    %v83 = vld [vmem:[%s2] sm:$0x1]
    %v84 = vld [vmem:[%s3] sm:$0x1]
    %vm85 = vcmask 121856
    %v86 = vsel %vm85, %v82, 0.0
    %87 = vadd.xlane.f32.xlu0 %v86
    %v88 = vpop.xlane.xlu0 %87
    %v89 = vrcp.pop 15.0
    %v90 = vmul.f32 %v88, %v89
    %v91 = vsub.f32 %v82, %v90
    %v92 = vmul.f32 %v91, %v91
    %v93 = vsel %vm85, %v92, 0.0
    %94 = vadd.xlane.f32.xlu0 %v93
    %v95 = vpop.xlane.xlu0 %94
    %v96 = vmul.f32 %v95, %v89
    %v97 = vadd.f32 %v96, 1e-05
    %v98 = vrsqrt.pop %v97
    %v99 = vmul.f32 %v91, %v98
    %v101 = vlaneseq
    %v102 = vshrl.u32 %v101, 7
    %v103 = vsub.s32 0, %v102
    %v104 = vrot.slane %v83, %v103
    %v106 = vmul.f32 %v99, %v104
    %v108 = vlaneseq
    %v109 = vshrl.u32 %v108, 7
    %v110 = vsub.s32 0, %v109
    %v111 = vrot.slane %v84, %v110
    %v113 = vadd.f32 %v106, %v111
    %v114 = vmax.f32 %v113, -3.0
    %v115 = vmin.f32 %v114, 3.0
    %v116 = vld [vmem:[%s4] sm:$0xff]
    %v117 = vld [vmem:[%s4 + $0x8] sm:$0xff]
    %v118 = vld [vmem:[%s4 + $0x10] sm:$0x7f]
    %v119 = vld [vmem:[%s4 + $0x18] sm:$0x7f]
    %v120 = vld [vmem:[%s5] sm:$0x3]
    %v122 = vlaneseq
    %v123 = vshrl.u32 %v122, 7
    %v124 = vsub.s32 0, %v123
    %v125 = vrot.slane %v120, %v124
    %v126 = vlaneseq
    %v127 = vshrl.u32 %v126, 7
    %v128 = vsub.s32 1, %v127
    %v129 = vrot.slane %v120, %v128
    %v133 = vsel %vm85, %v115, 0
    %vm135 = vcmask 1046528
    %v137 = vsel %vm135, %v118, 0
    %v140 = vsel %vm135, %v119, 0
    %142 = vmatprep.subr.mxu0 %v117
    %143 = vmatpush1.msra.mxu0 %v116
    %144 = vmatprep.subr.mxu0 %v140
    %145 = vmatpush1.msra.mxu0 %v137
    %146 = vmatprep.subr.mxu0 0.0
    %147 = vmatpush1.msra.mxu0 0.0
    %148 = vmatprep.subr.mxu0 0.0
    %149 = vmatpush1.msra.mxu0 0.0
    %150 = vmatprep.subr.mxu0 0.0
    %151 = vmatpush1.msra.mxu0 0.0
    %152 = vmatprep.subr.mxu0 0.0
    %153 = vmatpush1.msra.mxu0 0.0
    %154 = vmatprep.subr.mxu0 0.0
    %155 = vmatpush1.msra.mxu0 0.0
    %156 = vmatprep.subr.mxu0 0.0
    %157 = vmatpush1.msra.mxu0 0.0
    %158 = vmatprep.subr.mxu0 0.0
    %159 = vmatpush1.msra.mxu0 0.0
    %160 = vmatprep.subr.mxu0 0.0
    %161 = vmatpush1.msra.mxu0 0.0
    %162 = vmatprep.subr.mxu0 0.0
    %163 = vmatpush1.msra.mxu0 0.0
    %164 = vmatprep.subr.mxu0 0.0
    %165 = vmatpush1.msra.mxu0 0.0
    %166 = vmatprep.subr.mxu0 0.0
    %167 = vmatpush1.msra.mxu0 0.0
    %168 = vmatprep.subr.mxu0 0.0
    %169 = vmatpush1.msra.mxu0 0.0
    %170 = vmatprep.subr.mxu0 0.0
    %171 = vmatpush1.msra.mxu0 0.0
    %172 = vmatprep.subr.mxu0 0.0
    %173 = vmatpush1.msra.mxu0 0.0
    %174 = vmatprep.subr.mxu0 0.0
    %175 = vmatpush1.msra.mxu0 0.0
    %176 = vmatprep.subr.mxu0 0.0
    %177 = vmatpush1.msra.mxu0 0.0
    %178 = vmatprep.subr.mxu0 0.0
    %179 = vmatpush1.msra.mxu0 0.0
    %180 = vmatprep.subr.mxu0 0.0
    %181 = vmatpush1.msra.mxu0 0.0
    %182 = vmatprep.subr.mxu0 0.0
    %183 = vmatpush1.msra.mxu0 0.0
    %184 = vmatprep.subr.mxu0 0.0
    %185 = vmatpush1.msra.mxu0 0.0
    %186 = vmatprep.subr.mxu0 0.0
    %187 = vmatpush1.msra.mxu0 0.0
    %188 = vmatprep.subr.mxu0 0.0
    %189 = vmatpush1.msra.mxu0 0.0
    %190 = vmatprep.subr.mxu0 0.0
    %191 = vmatpush1.msra.mxu0 0.0
    %192 = vmatprep.subr.mxu0 0.0
    %193 = vmatpush1.msra.mxu0 0.0
    %194 = vmatprep.subr.mxu0 0.0
    %195 = vmatpush1.msra.mxu0 0.0
    %196 = vmatprep.subr.mxu0 0.0
    %197 = vmatpush1.msra.mxu0 0.0
    %198 = vmatprep.subr.mxu0 0.0
    %199 = vmatpush1.msra.mxu0 0.0
    %200 = vmatprep.subr.mxu0 0.0
    %201 = vmatpush1.msra.mxu0 0.0
    %202 = vmatprep.subr.mxu0 0.0
    %203 = vmatpush1.msra.mxu0 0.0
    %204 = vmatprep.subr.mxu0 0.0
    %205 = vmatpush1.msra.mxu0 0.0
    %206 = vmatprep.mubr.f32.mxu0 0.0
    %207 = vmatmul.mubr.f32.gmra.mrb[0].mxu0 %v133
    %v208 = vpop.f32.mrb[0].mxu0
    %v209 = vadd.f32 %v125, %v208
    %v210 = vpop.f32.mrb[0].mxu0
    %v211 = vadd.f32 %v129, %v210
    %212 = vdwg.mxu0
    %v213 = vmax.f32 %v209, 0.0
    %v214 = vmax.f32 %v211, 0.0
    %v215 = vld [vmem:[%s6] sm:$0x3]
    %v216 = vld [vmem:[%s7] sm:$0x3]
    %v217 = vadd.f32 %v213, %v214
    %218 = vadd.xlane.f32.xlu0 %v217
    %v219 = vpop.xlane.xlu0 %218
    %v220 = vrcp.pop 256.0
    %v221 = vmul.f32 %v219, %v220
    %v222 = vsub.f32 %v213, %v221
    %v223 = vsub.f32 %v214, %v221
    %v224 = vmul.f32 %v222, %v222
    %v225 = vmul.f32 %v223, %v223
    %v226 = vadd.f32 %v224, %v225
    %227 = vadd.xlane.f32.xlu0 %v226
    %v228 = vpop.xlane.xlu0 %227
    %v229 = vmul.f32 %v228, %v220
    %v230 = vadd.f32 %v229, 1e-05
    %v231 = vrsqrt.pop %v230
    %v232 = vmul.f32 %v222, %v231
    %v233 = vmul.f32 %v223, %v231
    %v235 = vlaneseq
    %v236 = vshrl.u32 %v235, 7
    %v237 = vsub.s32 0, %v236
    %v238 = vrot.slane %v215, %v237
    %v239 = vlaneseq
    %v240 = vshrl.u32 %v239, 7
    %v241 = vsub.s32 1, %v240
    %v242 = vrot.slane %v215, %v241
    %v245 = vmul.f32 %v232, %v238
    %v246 = vmul.f32 %v233, %v242
    %v248 = vlaneseq
    %v249 = vshrl.u32 %v248, 7
    %v250 = vsub.s32 0, %v249
    %v251 = vrot.slane %v216, %v250
    %v252 = vlaneseq
    %v253 = vshrl.u32 %v252, 7
    %v254 = vsub.s32 1, %v253
    %v255 = vrot.slane %v216, %v254
    %v258 = vadd.f32 %v245, %v251
    %v259 = vadd.f32 %v246, %v255
    %v260 = vld [vmem:[#allocation2] sm:$0xff]
    %v261 = vld [vmem:[#allocation2 + $0x8] sm:$0xff]
    %v262 = vld [vmem:[#allocation2 + $0x10] sm:$0xff]
    %v263 = vld [vmem:[#allocation2 + $0x18] sm:$0xff]
    %v264 = vld [vmem:[#allocation2 + $0x20] sm:$0xff]
    %v265 = vld [vmem:[#allocation2 + $0x28] sm:$0xff]
    %v266 = vld [vmem:[#allocation2 + $0x30] sm:$0xff]
    %v267 = vld [vmem:[#allocation2 + $0x38] sm:$0xff]
    %v268 = vld [vmem:[#allocation2 + $0x40] sm:$0xff]
    %v269 = vld [vmem:[#allocation2 + $0x48] sm:$0xff]
    %v270 = vld [vmem:[#allocation2 + $0x50] sm:$0xff]
    %v271 = vld [vmem:[#allocation2 + $0x58] sm:$0xff]
    %v272 = vld [vmem:[#allocation2 + $0x60] sm:$0xff]
    %v273 = vld [vmem:[#allocation2 + $0x68] sm:$0xff]
    %v274 = vld [vmem:[#allocation2 + $0x70] sm:$0xff]
    %v275 = vld [vmem:[#allocation2 + $0x78] sm:$0xff]
    %v276 = vld [vmem:[#allocation2 + $0x80] sm:$0xff]
    %v277 = vld [vmem:[#allocation2 + $0x88] sm:$0xff]
    %v278 = vld [vmem:[#allocation2 + $0x90] sm:$0xff]
    %v279 = vld [vmem:[#allocation2 + $0x98] sm:$0xff]
    %v280 = vld [vmem:[#allocation2 + $0xa0] sm:$0xff]
    %v281 = vld [vmem:[#allocation2 + $0xa8] sm:$0xff]
    %v282 = vld [vmem:[#allocation2 + $0xb0] sm:$0xff]
    %v283 = vld [vmem:[#allocation2 + $0xb8] sm:$0xff]
    %v284 = vld [vmem:[#allocation2 + $0xc0] sm:$0xff]
    %v285 = vld [vmem:[#allocation2 + $0xc8] sm:$0xff]
    %v286 = vld [vmem:[#allocation2 + $0xd0] sm:$0xff]
    %v287 = vld [vmem:[#allocation2 + $0xd8] sm:$0xff]
    %v288 = vld [vmem:[#allocation2 + $0xe0] sm:$0xff]
    %v289 = vld [vmem:[#allocation2 + $0xe8] sm:$0xff]
    %v290 = vld [vmem:[#allocation2 + $0xf0] sm:$0xff]
    %v291 = vld [vmem:[#allocation2 + $0xf8] sm:$0xff]
    %v292 = vld [vmem:[#allocation2 + $0x100] sm:$0xff]
    %v293 = vld [vmem:[#allocation2 + $0x108] sm:$0xff]
    %v294 = vld [vmem:[#allocation2 + $0x110] sm:$0xff]
    %v295 = vld [vmem:[#allocation2 + $0x118] sm:$0xff]
    %v296 = vld [vmem:[#allocation2 + $0x120] sm:$0xff]
    %v297 = vld [vmem:[#allocation2 + $0x128] sm:$0xff]
    %v298 = vld [vmem:[#allocation2 + $0x130] sm:$0xff]
    %v299 = vld [vmem:[#allocation2 + $0x138] sm:$0xff]
    %v300 = vld [vmem:[#allocation2 + $0x140] sm:$0xff]
    %v301 = vld [vmem:[#allocation2 + $0x148] sm:$0xff]
    %v302 = vld [vmem:[#allocation2 + $0x150] sm:$0xff]
    %v303 = vld [vmem:[#allocation2 + $0x158] sm:$0xff]
    %v304 = vld [vmem:[#allocation2 + $0x160] sm:$0xff]
    %v305 = vld [vmem:[#allocation2 + $0x168] sm:$0xff]
    %v306 = vld [vmem:[#allocation2 + $0x170] sm:$0xff]
    %v307 = vld [vmem:[#allocation2 + $0x178] sm:$0xff]
    %v308 = vld [vmem:[#allocation2 + $0x180] sm:$0xff]
    %v309 = vld [vmem:[#allocation2 + $0x188] sm:$0xff]
    %v310 = vld [vmem:[#allocation2 + $0x190] sm:$0xff]
    %v311 = vld [vmem:[#allocation2 + $0x198] sm:$0xff]
    %v312 = vld [vmem:[#allocation2 + $0x1a0] sm:$0xff]
    %v313 = vld [vmem:[#allocation2 + $0x1a8] sm:$0xff]
    %v314 = vld [vmem:[#allocation2 + $0x1b0] sm:$0xff]
    %v315 = vld [vmem:[#allocation2 + $0x1b8] sm:$0xff]
    %v316 = vld [vmem:[#allocation2 + $0x1c0] sm:$0xff]
    %v317 = vld [vmem:[#allocation2 + $0x1c8] sm:$0xff]
    %v318 = vld [vmem:[#allocation2 + $0x1d0] sm:$0xff]
    %v319 = vld [vmem:[#allocation2 + $0x1d8] sm:$0xff]
    %v320 = vld [vmem:[#allocation2 + $0x1e0] sm:$0xff]
    %v321 = vld [vmem:[#allocation2 + $0x1e8] sm:$0xff]
    %v322 = vld [vmem:[#allocation2 + $0x1f0] sm:$0xff]
    %v323 = vld [vmem:[#allocation2 + $0x1f8] sm:$0xff]
    %v324 = vld [vmem:[%s9] sm:$0x3]
    %v326 = vlaneseq
    %v327 = vshrl.u32 %v326, 7
    %v328 = vsub.s32 0, %v327
    %v329 = vrot.slane %v324, %v328
    %v330 = vlaneseq
    %v331 = vshrl.u32 %v330, 7
    %v332 = vsub.s32 1, %v331
    %v333 = vrot.slane %v324, %v332
    %336 = vmatprep.subr.mxu0 %v261
    %337 = vmatpush1.msra.mxu0 %v260
    %338 = vmatprep.subr.mxu0 %v263
    %339 = vmatpush1.msra.mxu0 %v262
    %340 = vmatprep.subr.mxu0 %v265
    %341 = vmatpush1.msra.mxu0 %v264
    %342 = vmatprep.subr.mxu0 %v267
    %343 = vmatpush1.msra.mxu0 %v266
    %344 = vmatprep.subr.mxu0 %v269
    %345 = vmatpush1.msra.mxu0 %v268
    %346 = vmatprep.subr.mxu0 %v271
    %347 = vmatpush1.msra.mxu0 %v270
    %348 = vmatprep.subr.mxu0 %v273
    %349 = vmatpush1.msra.mxu0 %v272
    %350 = vmatprep.subr.mxu0 %v275
    %351 = vmatpush1.msra.mxu0 %v274
    %352 = vmatprep.subr.mxu0 %v277
    %353 = vmatpush1.msra.mxu0 %v276
    %354 = vmatprep.subr.mxu0 %v279
    %355 = vmatpush1.msra.mxu0 %v278
    %356 = vmatprep.subr.mxu0 %v281
    %357 = vmatpush1.msra.mxu0 %v280
    %358 = vmatprep.subr.mxu0 %v283
    %359 = vmatpush1.msra.mxu0 %v282
    %360 = vmatprep.subr.mxu0 %v285
    %361 = vmatpush1.msra.mxu0 %v284
    %362 = vmatprep.subr.mxu0 %v287
    %363 = vmatpush1.msra.mxu0 %v286
    %364 = vmatprep.subr.mxu0 %v289
    %365 = vmatpush1.msra.mxu0 %v288
    %366 = vmatprep.subr.mxu0 %v291
    %367 = vmatpush1.msra.mxu0 %v290
    %368 = vmatprep.subr.mxu0 %v293
    %369 = vmatpush1.msra.mxu0 %v292
    %370 = vmatprep.subr.mxu0 %v295
    %371 = vmatpush1.msra.mxu0 %v294
    %372 = vmatprep.subr.mxu0 %v297
    %373 = vmatpush1.msra.mxu0 %v296
    %374 = vmatprep.subr.mxu0 %v299
    %375 = vmatpush1.msra.mxu0 %v298
    %376 = vmatprep.subr.mxu0 %v301
    %377 = vmatpush1.msra.mxu0 %v300
    %378 = vmatprep.subr.mxu0 %v303
    %379 = vmatpush1.msra.mxu0 %v302
    %380 = vmatprep.subr.mxu0 %v305
    %381 = vmatpush1.msra.mxu0 %v304
    %382 = vmatprep.subr.mxu0 %v307
    %383 = vmatpush1.msra.mxu0 %v306
    %384 = vmatprep.subr.mxu0 %v309
    %385 = vmatpush1.msra.mxu0 %v308
    %386 = vmatprep.subr.mxu0 %v311
    %387 = vmatpush1.msra.mxu0 %v310
    %388 = vmatprep.subr.mxu0 %v313
    %389 = vmatpush1.msra.mxu0 %v312
    %390 = vmatprep.subr.mxu0 %v315
    %391 = vmatpush1.msra.mxu0 %v314
    %392 = vmatprep.subr.mxu0 %v317
    %393 = vmatpush1.msra.mxu0 %v316
    %394 = vmatprep.subr.mxu0 %v319
    %395 = vmatpush1.msra.mxu0 %v318
    %396 = vmatprep.subr.mxu0 %v321
    %397 = vmatpush1.msra.mxu0 %v320
    %398 = vmatprep.subr.mxu0 %v323
    %399 = vmatpush1.msra.mxu0 %v322
    %400 = vmatprep.mubr.f32.mxu0 %v259
    %401 = vmatmul.mubr.f32.gmra.mrb[0].mxu0 %v258
    %v402 = vpop.f32.mrb[0].mxu0
    %v403 = vadd.f32 %v329, %v402
    %v404 = vpop.f32.mrb[0].mxu0
    %v405 = vadd.f32 %v333, %v404
    %406 = vdwg.mxu0
    %v407 = vmax.f32 %v403, 0.0
    %v408 = vmax.f32 %v405, 0.0
    %v409 = vld [vmem:[%s10] sm:$0x3]
    %v410 = vld [vmem:[%s11] sm:$0x3]
    %v411 = vadd.f32 %v407, %v408
    %412 = vadd.xlane.f32.xlu0 %v411
    %v413 = vpop.xlane.xlu0 %412
    %v414 = vmul.f32 %v413, %v220
    %v415 = vsub.f32 %v407, %v414
    %v416 = vsub.f32 %v408, %v414
    %v417 = vmul.f32 %v415, %v415
    %v418 = vmul.f32 %v416, %v416
    %v419 = vadd.f32 %v417, %v418
    %420 = vadd.xlane.f32.xlu0 %v419
    %v421 = vpop.xlane.xlu0 %420
    %v422 = vmul.f32 %v421, %v220
    %v423 = vadd.f32 %v422, 1e-05
    %v424 = vrsqrt.pop %v423
    %v425 = vmul.f32 %v415, %v424
    %v426 = vmul.f32 %v416, %v424
    %v428 = vlaneseq
    %v429 = vshrl.u32 %v428, 7
    %v430 = vsub.s32 0, %v429
    %v431 = vrot.slane %v409, %v430
    %v432 = vlaneseq
    %v433 = vshrl.u32 %v432, 7
    %v434 = vsub.s32 1, %v433
    %v435 = vrot.slane %v409, %v434
    %v438 = vmul.f32 %v425, %v431
    %v439 = vmul.f32 %v426, %v435
    %v441 = vlaneseq
    %v442 = vshrl.u32 %v441, 7
    %v443 = vsub.s32 0, %v442
    %v444 = vrot.slane %v410, %v443
    %v445 = vlaneseq
    %v446 = vshrl.u32 %v445, 7
    %v447 = vsub.s32 1, %v446
    %v448 = vrot.slane %v410, %v447
    %v451 = vadd.f32 %v438, %v444
    %v452 = vadd.f32 %v439, %v448
    %v453 = vld [vmem:[#allocation5] sm:$0xff]
    %v454 = vld [vmem:[#allocation5 + $0x8] sm:$0xff]
    %v455 = vld [vmem:[#allocation5 + $0x10] sm:$0xff]
    %v456 = vld [vmem:[#allocation5 + $0x18] sm:$0xff]
    %v457 = vld [vmem:[#allocation5 + $0x20] sm:$0xff]
    %v458 = vld [vmem:[#allocation5 + $0x28] sm:$0xff]
    %v459 = vld [vmem:[#allocation5 + $0x30] sm:$0xff]
    %v460 = vld [vmem:[#allocation5 + $0x38] sm:$0xff]
    %v461 = vld [vmem:[#allocation5 + $0x40] sm:$0xff]
    %v462 = vld [vmem:[#allocation5 + $0x48] sm:$0xff]
    %v463 = vld [vmem:[#allocation5 + $0x50] sm:$0xff]
    %v464 = vld [vmem:[#allocation5 + $0x58] sm:$0xff]
    %v465 = vld [vmem:[#allocation5 + $0x60] sm:$0xff]
    %v466 = vld [vmem:[#allocation5 + $0x68] sm:$0xff]
    %v467 = vld [vmem:[#allocation5 + $0x70] sm:$0xff]
    %v468 = vld [vmem:[#allocation5 + $0x78] sm:$0xff]
    %v469 = vld [vmem:[#allocation5 + $0x80] sm:$0xff]
    %v470 = vld [vmem:[#allocation5 + $0x88] sm:$0xff]
    %v471 = vld [vmem:[#allocation5 + $0x90] sm:$0xff]
    %v472 = vld [vmem:[#allocation5 + $0x98] sm:$0xff]
    %v473 = vld [vmem:[#allocation5 + $0xa0] sm:$0xff]
    %v474 = vld [vmem:[#allocation5 + $0xa8] sm:$0xff]
    %v475 = vld [vmem:[#allocation5 + $0xb0] sm:$0xff]
    %v476 = vld [vmem:[#allocation5 + $0xb8] sm:$0xff]
    %v477 = vld [vmem:[#allocation5 + $0xc0] sm:$0xff]
    %v478 = vld [vmem:[#allocation5 + $0xc8] sm:$0xff]
    %v479 = vld [vmem:[#allocation5 + $0xd0] sm:$0xff]
    %v480 = vld [vmem:[#allocation5 + $0xd8] sm:$0xff]
    %v481 = vld [vmem:[#allocation5 + $0xe0] sm:$0xff]
    %v482 = vld [vmem:[#allocation5 + $0xe8] sm:$0xff]
    %v483 = vld [vmem:[#allocation5 + $0xf0] sm:$0xff]
    %v484 = vld [vmem:[#allocation5 + $0xf8] sm:$0xff]
    %v485 = vld [vmem:[#allocation5 + $0x100] sm:$0xff]
    %v486 = vld [vmem:[#allocation5 + $0x108] sm:$0xff]
    %v487 = vld [vmem:[#allocation5 + $0x110] sm:$0xff]
    %v488 = vld [vmem:[#allocation5 + $0x118] sm:$0xff]
    %v489 = vld [vmem:[#allocation5 + $0x120] sm:$0xff]
    %v490 = vld [vmem:[#allocation5 + $0x128] sm:$0xff]
    %v491 = vld [vmem:[#allocation5 + $0x130] sm:$0xff]
    %v492 = vld [vmem:[#allocation5 + $0x138] sm:$0xff]
    %v493 = vld [vmem:[#allocation5 + $0x140] sm:$0xff]
    %v494 = vld [vmem:[#allocation5 + $0x148] sm:$0xff]
    %v495 = vld [vmem:[#allocation5 + $0x150] sm:$0xff]
    %v496 = vld [vmem:[#allocation5 + $0x158] sm:$0xff]
    %v497 = vld [vmem:[#allocation5 + $0x160] sm:$0xff]
    %v498 = vld [vmem:[#allocation5 + $0x168] sm:$0xff]
    %v499 = vld [vmem:[#allocation5 + $0x170] sm:$0xff]
    %v500 = vld [vmem:[#allocation5 + $0x178] sm:$0xff]
    %v501 = vld [vmem:[#allocation5 + $0x180] sm:$0xff]
    %v502 = vld [vmem:[#allocation5 + $0x188] sm:$0xff]
    %v503 = vld [vmem:[#allocation5 + $0x190] sm:$0xff]
    %v504 = vld [vmem:[#allocation5 + $0x198] sm:$0xff]
    %v505 = vld [vmem:[#allocation5 + $0x1a0] sm:$0xff]
    %v506 = vld [vmem:[#allocation5 + $0x1a8] sm:$0xff]
    %v507 = vld [vmem:[#allocation5 + $0x1b0] sm:$0xff]
    %v508 = vld [vmem:[#allocation5 + $0x1b8] sm:$0xff]
    %v509 = vld [vmem:[#allocation5 + $0x1c0] sm:$0xff]
    %v510 = vld [vmem:[#allocation5 + $0x1c8] sm:$0xff]
    %v511 = vld [vmem:[#allocation5 + $0x1d0] sm:$0xff]
    %v512 = vld [vmem:[#allocation5 + $0x1d8] sm:$0xff]
    %v513 = vld [vmem:[#allocation5 + $0x1e0] sm:$0xff]
    %v514 = vld [vmem:[#allocation5 + $0x1e8] sm:$0xff]
    %v515 = vld [vmem:[#allocation5 + $0x1f0] sm:$0xff]
    %v516 = vld [vmem:[#allocation5 + $0x1f8] sm:$0xff]
    %v517 = vld [vmem:[%s13] sm:$0x3]
    %v519 = vlaneseq
    %v520 = vshrl.u32 %v519, 7
    %v521 = vsub.s32 0, %v520
    %v522 = vrot.slane %v517, %v521
    %v523 = vlaneseq
    %v524 = vshrl.u32 %v523, 7
    %v525 = vsub.s32 1, %v524
    %v526 = vrot.slane %v517, %v525
    %529 = vmatprep.subr.mxu0 %v454
    %530 = vmatpush1.msra.mxu0 %v453
    %531 = vmatprep.subr.mxu0 %v456
    %532 = vmatpush1.msra.mxu0 %v455
    %533 = vmatprep.subr.mxu0 %v458
    %534 = vmatpush1.msra.mxu0 %v457
    %535 = vmatprep.subr.mxu0 %v460
    %536 = vmatpush1.msra.mxu0 %v459
    %537 = vmatprep.subr.mxu0 %v462
    %538 = vmatpush1.msra.mxu0 %v461
    %539 = vmatprep.subr.mxu0 %v464
    %540 = vmatpush1.msra.mxu0 %v463
    %541 = vmatprep.subr.mxu0 %v466
    %542 = vmatpush1.msra.mxu0 %v465
    %543 = vmatprep.subr.mxu0 %v468
    %544 = vmatpush1.msra.mxu0 %v467
    %545 = vmatprep.subr.mxu0 %v470
    %546 = vmatpush1.msra.mxu0 %v469
    %547 = vmatprep.subr.mxu0 %v472
    %548 = vmatpush1.msra.mxu0 %v471
    %549 = vmatprep.subr.mxu0 %v474
    %550 = vmatpush1.msra.mxu0 %v473
    %551 = vmatprep.subr.mxu0 %v476
    %552 = vmatpush1.msra.mxu0 %v475
    %553 = vmatprep.subr.mxu0 %v478
    %554 = vmatpush1.msra.mxu0 %v477
    %555 = vmatprep.subr.mxu0 %v480
    %556 = vmatpush1.msra.mxu0 %v479
    %557 = vmatprep.subr.mxu0 %v482
    %558 = vmatpush1.msra.mxu0 %v481
    %559 = vmatprep.subr.mxu0 %v484
    %560 = vmatpush1.msra.mxu0 %v483
    %561 = vmatprep.subr.mxu0 %v486
    %562 = vmatpush1.msra.mxu0 %v485
    %563 = vmatprep.subr.mxu0 %v488
    %564 = vmatpush1.msra.mxu0 %v487
    %565 = vmatprep.subr.mxu0 %v490
    %566 = vmatpush1.msra.mxu0 %v489
    %567 = vmatprep.subr.mxu0 %v492
    %568 = vmatpush1.msra.mxu0 %v491
    %569 = vmatprep.subr.mxu0 %v494
    %570 = vmatpush1.msra.mxu0 %v493
    %571 = vmatprep.subr.mxu0 %v496
    %572 = vmatpush1.msra.mxu0 %v495
    %573 = vmatprep.subr.mxu0 %v498
    %574 = vmatpush1.msra.mxu0 %v497
    %575 = vmatprep.subr.mxu0 %v500
    %576 = vmatpush1.msra.mxu0 %v499
    %577 = vmatprep.subr.mxu0 %v502
    %578 = vmatpush1.msra.mxu0 %v501
    %579 = vmatprep.subr.mxu0 %v504
    %580 = vmatpush1.msra.mxu0 %v503
    %581 = vmatprep.subr.mxu0 %v506
    %582 = vmatpush1.msra.mxu0 %v505
    %583 = vmatprep.subr.mxu0 %v508
    %584 = vmatpush1.msra.mxu0 %v507
    %585 = vmatprep.subr.mxu0 %v510
    %586 = vmatpush1.msra.mxu0 %v509
    %587 = vmatprep.subr.mxu0 %v512
    %588 = vmatpush1.msra.mxu0 %v511
    %589 = vmatprep.subr.mxu0 %v514
    %590 = vmatpush1.msra.mxu0 %v513
    %591 = vmatprep.subr.mxu0 %v516
    %592 = vmatpush1.msra.mxu0 %v515
    %593 = vmatprep.mubr.f32.mxu0 %v452
    %594 = vmatmul.mubr.f32.gmra.mrb[0].mxu0 %v451
    %v595 = vpop.f32.mrb[0].mxu0
    %v596 = vadd.f32 %v522, %v595
    %v597 = vpop.f32.mrb[0].mxu0
    %v598 = vadd.f32 %v526, %v597
    %599 = vdwg.mxu0
    %v600 = vmax.f32 %v596, 0.0
    %v601 = vmax.f32 %v598, 0.0
    %v602 = vld [vmem:[%s14] sm:$0xff]
    %v603 = vld [vmem:[%s14 + $0x8] sm:$0xff]
    %v604 = vld [vmem:[%s14 + $0x10] sm:$0xff]
    %v605 = vld [vmem:[%s14 + $0x18] sm:$0xff]
    %v606 = vld [vmem:[%s14 + $0x20] sm:$0xff]
    %v607 = vld [vmem:[%s14 + $0x28] sm:$0xff]
    %v608 = vld [vmem:[%s14 + $0x30] sm:$0xff]
    %v609 = vld [vmem:[%s14 + $0x38] sm:$0xff]
    %v610 = vld [vmem:[%s14 + $0x40] sm:$0xff]
    %v611 = vld [vmem:[%s14 + $0x48] sm:$0xff]
    %v612 = vld [vmem:[%s14 + $0x50] sm:$0xff]
    %v613 = vld [vmem:[%s14 + $0x58] sm:$0xff]
    %v614 = vld [vmem:[%s14 + $0x60] sm:$0xff]
    %v615 = vld [vmem:[%s14 + $0x68] sm:$0xff]
    %v616 = vld [vmem:[%s14 + $0x70] sm:$0xff]
    %v617 = vld [vmem:[%s14 + $0x78] sm:$0xff]
    %v618 = vld [vmem:[%s14 + $0x80] sm:$0xff]
    %v619 = vld [vmem:[%s14 + $0x88] sm:$0xff]
    %v620 = vld [vmem:[%s14 + $0x90] sm:$0xff]
    %v621 = vld [vmem:[%s14 + $0x98] sm:$0xff]
    %v622 = vld [vmem:[%s14 + $0xa0] sm:$0xff]
    %v623 = vld [vmem:[%s14 + $0xa8] sm:$0xff]
    %v624 = vld [vmem:[%s14 + $0xb0] sm:$0xff]
    %v625 = vld [vmem:[%s14 + $0xb8] sm:$0xff]
    %v626 = vld [vmem:[%s14 + $0xc0] sm:$0xff]
    %v627 = vld [vmem:[%s14 + $0xc8] sm:$0xff]
    %v628 = vld [vmem:[%s14 + $0xd0] sm:$0xff]
    %v629 = vld [vmem:[%s14 + $0xd8] sm:$0xff]
    %v630 = vld [vmem:[%s14 + $0xe0] sm:$0xff]
    %v631 = vld [vmem:[%s14 + $0xe8] sm:$0xff]
    %v632 = vld [vmem:[%s14 + $0xf0] sm:$0xff]
    %v633 = vld [vmem:[%s14 + $0xf8] sm:$0xff]
    %v634 = vld [vmem:[%s15] sm:$0x1]
    %v636 = vlaneseq
    %v637 = vshrl.u32 %v636, 7
    %v638 = vsub.s32 0, %v637
    %v639 = vrot.slane %v634, %v638
    %641 = vmatprep.subr.mxu0 0.0
    %642 = vmatpush1.msra.mxu0 %v602
    %643 = vmatprep.subr.mxu0 0.0
    %644 = vmatpush1.msra.mxu0 %v603
    %645 = vmatprep.subr.mxu0 0.0
    %646 = vmatpush1.msra.mxu0 %v604
    %647 = vmatprep.subr.mxu0 0.0
    %648 = vmatpush1.msra.mxu0 %v605
    %649 = vmatprep.subr.mxu0 0.0
    %650 = vmatpush1.msra.mxu0 %v606
    %651 = vmatprep.subr.mxu0 0.0
    %652 = vmatpush1.msra.mxu0 %v607
    %653 = vmatprep.subr.mxu0 0.0
    %654 = vmatpush1.msra.mxu0 %v608
    %655 = vmatprep.subr.mxu0 0.0
    %656 = vmatpush1.msra.mxu0 %v609
    %657 = vmatprep.subr.mxu0 0.0
    %658 = vmatpush1.msra.mxu0 %v610
    %659 = vmatprep.subr.mxu0 0.0
    %660 = vmatpush1.msra.mxu0 %v611
    %661 = vmatprep.subr.mxu0 0.0
    %662 = vmatpush1.msra.mxu0 %v612
    %663 = vmatprep.subr.mxu0 0.0
    %664 = vmatpush1.msra.mxu0 %v613
    %665 = vmatprep.subr.mxu0 0.0
    %666 = vmatpush1.msra.mxu0 %v614
    %667 = vmatprep.subr.mxu0 0.0
    %668 = vmatpush1.msra.mxu0 %v615
    %669 = vmatprep.subr.mxu0 0.0
    %670 = vmatpush1.msra.mxu0 %v616
    %671 = vmatprep.subr.mxu0 0.0
    %672 = vmatpush1.msra.mxu0 %v617
    %673 = vmatprep.subr.mxu0 0.0
    %674 = vmatpush1.msra.mxu0 %v618
    %675 = vmatprep.subr.mxu0 0.0
    %676 = vmatpush1.msra.mxu0 %v619
    %677 = vmatprep.subr.mxu0 0.0
    %678 = vmatpush1.msra.mxu0 %v620
    %679 = vmatprep.subr.mxu0 0.0
    %680 = vmatpush1.msra.mxu0 %v621
    %681 = vmatprep.subr.mxu0 0.0
    %682 = vmatpush1.msra.mxu0 %v622
    %683 = vmatprep.subr.mxu0 0.0
    %684 = vmatpush1.msra.mxu0 %v623
    %685 = vmatprep.subr.mxu0 0.0
    %686 = vmatpush1.msra.mxu0 %v624
    %687 = vmatprep.subr.mxu0 0.0
    %688 = vmatpush1.msra.mxu0 %v625
    %689 = vmatprep.subr.mxu0 0.0
    %690 = vmatpush1.msra.mxu0 %v626
    %691 = vmatprep.subr.mxu0 0.0
    %692 = vmatpush1.msra.mxu0 %v627
    %693 = vmatprep.subr.mxu0 0.0
    %694 = vmatpush1.msra.mxu0 %v628
    %695 = vmatprep.subr.mxu0 0.0
    %696 = vmatpush1.msra.mxu0 %v629
    %697 = vmatprep.subr.mxu0 0.0
    %698 = vmatpush1.msra.mxu0 %v630
    %699 = vmatprep.subr.mxu0 0.0
    %700 = vmatpush1.msra.mxu0 %v631
    %701 = vmatprep.subr.mxu0 0.0
    %702 = vmatpush1.msra.mxu0 %v632
    %703 = vmatprep.subr.mxu0 0.0
    %704 = vmatpush1.msra.mxu0 %v633
    %705 = vmatprep.mubr.f32.mxu0 %v601
    %706 = vmatmul.mubr.f32.gmra.mrb[0].mxu0 %v600
    %v707 = vpop.f32.mrb[0].mxu0
    %v708 = vadd.f32 %v639, %v707
    %v709 = vpop.f32.mrb[0].mxu0
    %710 = vdwg.mxu0
    %v711 = vmax.f32 %v708, -20.0
    %v712 = vmin.f32 %v711, 2.0
    %v713 = vmul.f32 %v712, 1.442695
    %v714 = vpow.pop %v713
    %v715 = vld [vmem:[%s1] sm:$0xff]
    %717 = vrot.lane.b32.xlu0 %v715, 4
    %v718 = vpop.permute.xlu0 %717
    %v720 = vmul.f32 %v714, %v718
    %722 = vrot.lane.b32.xlu0 %v720, 124
    %v723 = vpop.permute.xlu0 %722
    %v725 = vadd.f32 %v708, %v723
    %v726 = vtanh.pop %v725
    %v727 = vmul.f32 %v715, %v715
    %v728 = vadd.f32 %v712, 0.0
    %v729 = vsub.f32 0.0, %v728
    %v730 = vsub.f32 %v729, 0.9189385
    %v731 = vmul.f32 %v727, 0.5
    %733 = vrot.lane.b32.xlu0 %v731, 4
    %v734 = vpop.permute.xlu0 %733
    %v736 = vsub.f32 %v730, %v734
    %738 = vrot.lane.b32.xlu0 %v736, 124
    %v739 = vpop.permute.xlu0 %738
    %vm741 = vcmask 31744
    %v742 = vsel %vm741, %v739, 0.0
    %743 = vadd.xlane.f32.xlu0 %v742
    %v744 = vpop.xlane.xlu0 %743
    %v745 = vsub.f32 0.6931472, %v725
    %v746 = vmul.f32 %v725, -2.0
    %v747 = vmax.f32 %v746, 0.0
    %v748 = vand.u32 2147483647, %v746
    %v749 = vsub.f32 0.0, %v748
    %v750 = vmul.f32 %v749, 1.442695
    %v751 = vpow.pop %v750
    %v752 = vadd.f32 %v751, 1.0
    %v753 = vlog2.pop %v752
    %v754 = vmul.f32 %v753, 0.6931472
    %v755 = vmul.f32 -0.5, %v751
    %v756 = vadd.f32 %v755, 1.0
    %v757 = vmul.f32 %v756, %v751
    %v758 = vand.u32 2147483647, %v751
    %vm759 = vcmp.lt.f32.partialorder %v758, 0.0004427343
    %v760 = vsel %vm759, %v757, %v754
    %v761 = vadd.f32 %v747, %v760
    %v762 = vsub.f32 %v745, %v761
    %v763 = vmul.f32 %v762, 2.0
    %v764 = vsel %vm741, %v763, 0.0
    %765 = vadd.xlane.f32.xlu0 %v764
    %v766 = vpop.xlane.xlu0 %765
    %v767 = vsub.f32 %v744, %v766
    %v768 = vsel %vm741, %v726, %v767
    %vm769 = vcmask 39936
    %v770 = vsel %vm769, %v768, 0.0
    %771 = vst [vmem:[#allocation7] sm:$0xff] %v770
    // Predicated region
    $region74: #{tpu_custom_call.1} parent=1 // pred_check
      _
    $region75: #{tpu_custom_call.1} parent=1 // pred_check_branch
      %773 = sbr.rel (0) target = $region77
    $region76: #{tpu_custom_call.1} parent=1 // pred_region
      %s775 = ssub.s32 128, 128
      %776 = vsyncadd [#allocation4], %s775
      %s778 = sshll.u32 [#allocation7], 4
      %s779 = int_to_ptr.vmem [resolvable:$true] %s778
      %781 = dma.vmem_to_hbm [thread:$0]  %s779, 128, %s16, [#allocation4]
    $region77: #{tpu_custom_call.1} parent=1 // pred_fallthru
      _
    // Predicated region
    $region78: #{tpu_custom_call.1} parent=1 // pred_check
      _
    $region79: #{tpu_custom_call.1} parent=1 // pred_check_branch
      %783 = sbr.rel (0) target = $region81
    $region80: #{tpu_custom_call.1} parent=1 // pred_region
      %784 = dma.done [#allocation4], 128
    $region81: #{tpu_custom_call.1} parent=1 // pred_fallthru
      _
    %785 = vsyncpa [#allocation3], 1
    %786 = vsyncpa [#allocation6], 1
    %787 = vsyncpa [#allocation4], 1

</llo_original>
